<compile_context>
chip_gen: v6e
topology: v6e:2x2x1
jax: 0.10.0
libtpu: 0.0.40
codegen_flags: <defaults>
</compile_context>

<pallas_src>
import functools

import jax
import jax.numpy as jnp
from jax import lax
from jax.experimental import pallas as pl
from jax.experimental.pallas import tpu as pltpu


# bf16/f32 fallback path (v7x): each K chunk's partial sum must stay exact in
# the f32 MXU accumulator.  1024 * 128 * 128 == 2^24 is exactly representable.
_BF16_K_CHUNK = 1024
assert _BF16_K_CHUNK * 128 * 128 <= (1 << 24), "bf16-path exactness bound violated"


def get_quantize_range(bit_width):
    q_max = (1 << (bit_width - 1)) - 1
    q_min = -(1 << (bit_width - 1))
    return q_min, q_max


def _round_up(x, m):
    return ((x + m - 1) // m) * m


def _has_int8_mxu():
    """v5e/v6e (and earlier) have an integer MXU; v7x does not."""
    try:
        kind = jax.devices()[0].device_kind.lower()
    except Exception:
        return True
    return "7" not in kind


def _pick_tiles(M, K_pad, Cg_pad, groups, is_v7):
    """Pick the M tile and a vmem limit from a per-generation VMEM budget."""
    vmem_cap = (48 if is_v7 else 100) * 1024 * 1024
    budget = vmem_cap - 8 * 1024 * 1024          # headroom for compiler temps
    b_bytes = 2 * K_pad * Cg_pad                  # resident int8 B (dbl-buffered)
    tm = 8
    for cand in (512, 256, 128, 64, 32, 16, 8):
        a_bytes = 3 * cand * K_pad                # int8 A, up to Buffered(3)
        o_bytes = 2 * cand * Cg_pad               # int8 out, dbl-buffered
        tmp_bytes = 8 * cand * Cg_pad             # i32 acc + f32 epilogue temps
        misc = 4 * 8 * Cg_pad
        if a_bytes + b_bytes + o_bytes + tmp_bytes + misc <= budget:
            tm = cand
            break
    tm = min(tm, max(8, _round_up(M, 8)))
    if is_v7 and groups == 1:
        # Keep >= 2 M tiles so the 2 TensorCores both get work.
        tm = min(tm, max(8, _round_up(-(-M // 2), 8)))
    return tm, vmem_cap


def _qconv_gemm_kernel(a_ref, b_ref, bias_ref, scale_ref, o_ref, *,
                       out_zp, q_min, q_max, int8_mxu, k_chunk):
    # a_ref:     (tm, K_pad)      int8   im2col activation patches
    # b_ref:     (K_pad, Cg_pad)  int8   weights (K-major), VMEM-resident
    # bias_ref:  (1, Cg_pad)      int32  shifted quantized bias
    # scale_ref: (1, Cg_pad)      f32    in_scale * w_scale / out_scale
    # o_ref:     (tm, Cg_pad)     int8
    if int8_mxu:
        # Native int8 MXU: exact int32 accumulation over the whole K.
        acc = jnp.dot(a_ref[...], b_ref[...],
                      preferred_element_type=jnp.int32)
    else:
        # v7x: no integer MXU.  int8 values are exact in bf16; each chunk of
        # <= 1024 columns is exact in the f32 accumulator (<= 2^24), so the
        # f32 -> int32 cast per chunk is lossless.
        tm, cg = o_ref.shape
        k_tot = a_ref.shape[1]
        acc = jnp.zeros((tm, cg), jnp.int32)
        start = 0
        while start < k_tot:                      # static unroll
            size = min(k_chunk, k_tot - start)
            a = a_ref[:, start:start + size].astype(jnp.bfloat16)
            b = b_ref[start:start + size, :].astype(jnp.bfloat16)
            acc = acc + jnp.dot(
                a, b, preferred_element_type=jnp.float32).astype(jnp.int32)
            start += size

    acc = acc + bias_ref[...]
    y = acc.astype(jnp.float32) * scale_ref[...] + jnp.float32(out_zp)
    y = jnp.round(y)
    y = jnp.clip(y, q_min, q_max)
    o_ref[...] = y.astype(jnp.int8)


def _prepare_weights(weight, bias, w_scale, in_scale, out_scale, groups):
    """Build the (static) weight-side tensors once: K-major padded int8 B,
    padded int32 bias, padded f32 requant scale, plus shape metadata."""
    C_out, C_in_g, KH, KW = weight.shape
    G = groups
    C_out_g = C_out // G
    K = C_in_g * KH * KW
    K_pad = _round_up(K, 128)
    Cg_pad = _round_up(C_out_g, 128)
    # int32 accumulator bound: |sum| <= K * 128 * 128 must fit in int32.
    assert K * 128 * 128 < (1 << 31), "K too large for int32 accumulation"

    if bias is None:
        bias = jnp.zeros((C_out,), jnp.int32)
    scale = (jnp.float32(in_scale) * w_scale.astype(jnp.float32)
             / jnp.float32(out_scale))

    # (G*C_out_g, C_in_g, KH, KW) -> (G, C_out_g, K) -> (G, K, C_out_g)
    B = weight.reshape(G, C_out_g, K).transpose(0, 2, 1)
    B = jnp.pad(B, ((0, 0), (0, K_pad - K), (0, Cg_pad - C_out_g)))
    bias_all = jnp.pad(bias.astype(jnp.int32).reshape(G, 1, C_out_g),
                       ((0, 0), (0, 0), (0, Cg_pad - C_out_g)))
    scale_all = jnp.pad(scale.reshape(G, 1, C_out_g),
                        ((0, 0), (0, 0), (0, Cg_pad - C_out_g)))
    return dict(B_all=B, bias_all=bias_all, scale_all=scale_all,
                C_in_g=C_in_g, C_out_g=C_out_g, KH=KH, KW=KW,
                K=K, K_pad=K_pad, Cg_pad=Cg_pad, groups=G)


def _im2col_int8(x_pad, C_in_g, KH, KW, stride, dilation, H_out, W_out, groups):
    """int8 end-to-end im2col: (N, C, Hp, Wp) -> (G, M, K)."""
    N = x_pad.shape[0]
    sh, sw = stride
    dh, dw = dilation
    M = N * H_out * W_out
    K = C_in_g * KH * KW
    A_groups = []
    for g in range(groups):
        xg = x_pad[:, g * C_in_g:(g + 1) * C_in_g]
        cols = []
        for kh in range(KH):
            row = []
            for kw in range(KW):
                sl = lax.slice(
                    xg,
                    (0, 0, kh * dh, kw * dw),
                    (N, C_in_g, kh * dh + (H_out - 1) * sh + 1,
                     kw * dw + (W_out - 1) * sw + 1),
                    (1, 1, sh, sw))
                row.append(sl)
            cols.append(jnp.stack(row, axis=2))              # (N,Cg,KW,Ho,Wo)
        patches = jnp.stack(cols, axis=2)                    # (N,Cg,KH,KW,Ho,Wo)
        patches = patches.transpose(0, 4, 5, 1, 2, 3)        # (N,Ho,Wo,Cg,KH,KW)
        A_groups.append(patches.reshape(M, K))
    return jnp.stack(A_groups, axis=0)                       # (G, M, K) int8


def quantized_conv2d(x, weight, bias, in_zp, out_zp, in_scale, w_scale,
                     out_scale, stride, padding, dilation, groups,
                     feature_bit_width=8, weight_bit_width=8, prepared=None):
    """x: int8 NCHW. weight: int8 OIHW. bias: int32 (C_out,) or None.
    padding = (pad_h, pad_w), applied symmetrically (matches the module)."""
    if prepared is None:
        prepared = _prepare_weights(weight, bias, w_scale, float(in_scale),
                                    float(out_scale), groups)
    N, C_in, H, W = x.shape
    G = prepared["groups"]
    C_in_g, C_out_g = prepared["C_in_g"], prepared["C_out_g"]
    KH, KW = prepared["KH"], prepared["KW"]
    K, K_pad, Cg_pad = prepared["K"], prepared["K_pad"], prepared["Cg_pad"]
    C_out = G * C_out_g
    sh, sw = stride
    ph, pw = padding
    dh, dw = dilation
    q_min, q_max = get_quantize_range(feature_bit_width)

    # Pad with the *input zero point* (not zero), like the module's F.pad.
    x_pad = jnp.pad(x, ((0, 0), (0, 0), (ph, ph), (pw, pw)),
                    constant_values=jnp.int8(in_zp))
    Hp, Wp = H + 2 * ph, W + 2 * pw
    H_out = (Hp - dh * (KH - 1) - 1) // sh + 1
    W_out = (Wp - dw * (KW - 1) - 1) // sw + 1
    M = N * H_out * W_out

    int8_mxu = _has_int8_mxu()
    is_v7 = not int8_mxu
    tm, vmem_cap = _pick_tiles(M, K_pad, Cg_pad, G, is_v7)
    M_pad = _round_up(M, tm)
    m_tiles = M_pad // tm

    A = _im2col_int8(x_pad, C_in_g, KH, KW, stride, dilation,
                     H_out, W_out, G)                         # (G, M, K) int8
    A = jnp.pad(A, ((0, 0), (0, M_pad - M), (0, K_pad - K)))

    kernel = functools.partial(_qconv_gemm_kernel, out_zp=int(out_zp),
                               q_min=q_min, q_max=q_max,
                               int8_mxu=int8_mxu, k_chunk=_BF16_K_CHUNK)

    # A is the only streamed operand; deepen its pipeline when HBM-bound and
    # there are enough M tiles to keep 3 buffers busy.
    if m_tiles >= 3:
        a_spec = pl.BlockSpec((pl.Squeezed(), tm, K_pad),
                              lambda g, i: (g, i, 0),
                              pipeline_mode=pl.Buffered(3))
    else:
        a_spec = pl.BlockSpec((pl.Squeezed(), tm, K_pad),
                              lambda g, i: (g, i, 0))

    out = pl.pallas_call(
        kernel,
        out_shape=jax.ShapeDtypeStruct((G, M_pad, Cg_pad), jnp.int8),
        grid_spec=pltpu.PrefetchScalarGridSpec(
            num_scalar_prefetch=0,
            grid=(G, m_tiles),
            in_specs=[
                a_spec,
                # Weights: full K x Cg block, re-DMA'd only when g changes.
                pl.BlockSpec((pl.Squeezed(), K_pad, Cg_pad),
                             lambda g, i: (g, 0, 0)),
                pl.BlockSpec((pl.Squeezed(), 1, Cg_pad),
                             lambda g, i: (g, 0, 0)),
                pl.BlockSpec((pl.Squeezed(), 1, Cg_pad),
                             lambda g, i: (g, 0, 0)),
            ],
            out_specs=pl.BlockSpec((pl.Squeezed(), tm, Cg_pad),
                                   lambda g, i: (g, i, 0)),
        ),
        compiler_params=pltpu.CompilerParams(
            dimension_semantics=("parallel", "parallel"),
            vmem_limit_bytes=vmem_cap),
    )(A, prepared["B_all"], prepared["bias_all"], prepared["scale_all"])

    y = out[:, :M, :C_out_g]                                  # (G, M, Cg)
    y = y.reshape(G, N, H_out, W_out, C_out_g)
    y = y.transpose(1, 2, 3, 0, 4).reshape(N, H_out, W_out, C_out)
    return y.transpose(0, 3, 1, 2)                            # NCHW int8


class QuantizedConv2d:
    """JAX/Pallas analogue of the torch QuantizedConv2d module."""

    def __init__(self, weight, bias, in_zp, out_zp, in_scale, w_scale,
                 out_scale, stride, padding, dilation, groups,
                 feature_bit_width=8, weight_bit_width=8):
        self.weight = weight
        self.bias = bias
        self.input_zero_point = in_zp
        self.output_zero_point = out_zp
        self.input_scale = in_scale
        self.weight_scale = w_scale
        self.output_scale = out_scale
        self.stride = stride
        self.padding = padding          # (pad_h, pad_w), applied symmetrically
        self.dilation = dilation
        self.groups = groups
        self.feature_bit_width = feature_bit_width
        self.weight_bit_width = weight_bit_width
        # Precompute the weight-side tensors once (transposed/padded int8 B,
        # int32 bias, f32 requant scale) instead of per forward call.
        self._prepared = _prepare_weights(weight, bias, w_scale,
                                          float(in_scale), float(out_scale),
                                          groups)

    def __call__(self, x):
        return quantized_conv2d(
            x, self.weight, self.bias, self.input_zero_point,
            self.output_zero_point, self.input_scale, self.weight_scale,
            self.output_scale, self.stride, self.padding, self.dilation,
            self.groups, self.feature_bit_width, self.weight_bit_width,
            prepared=self._prepared)


def _reference(x, weight, bias, in_zp, out_zp, in_scale, w_scale, out_scale,
               stride, padding, dilation, groups, feature_bit_width=8):
    """Pure-JAX reference mirroring quantized_conv2d_layer (float conv path)."""
    ph, pw = padding
    q_min, q_max = get_quantize_range(feature_bit_width)
    x_pad = jnp.pad(x, ((0, 0), (0, 0), (ph, ph), (pw, pw)),
                    constant_values=jnp.int8(in_zp))
    out = lax.conv_general_dilated(
        x_pad.astype(jnp.float32), weight.astype(jnp.float32),
        window_strides=stride, padding='VALID', rhs_dilation=dilation,
        feature_group_count=groups,
        dimension_numbers=('NCHW', 'OIHW', 'NCHW'))
    out = jnp.round(out).astype(jnp.int32)
    if bias is not None:
        out = out + bias.reshape(1, -1, 1, 1)
    scale = (jnp.float32(in_scale) * w_scale.astype(jnp.float32)
             / jnp.float32(out_scale)).reshape(1, -1, 1, 1)
    y = out.astype(jnp.float32) * scale + jnp.float32(out_zp)
    y = jnp.round(y)
    y = jnp.clip(y, q_min, q_max)
    return y.astype(jnp.int8)


if __name__ == "__main__":
    key = jax.random.PRNGKey(0)

    def run_case(name, N, C_in, H, W, C_out, KH, KW, stride, padding,
                 dilation, groups, use_bias, case_key):
        kx, kw_, kb, ks = jax.random.split(case_key, 4)
        x = jax.random.randint(kx, (N, C_in, H, W), -128, 128).astype(jnp.int8)
        weight = jax.random.randint(kw_, (C_out, C_in // groups, KH, KW),
                                    -127, 128).astype(jnp.int8)
        bias = (jax.random.randint(kb, (C_out,), -512, 512).astype(jnp.int32)
                if use_bias else None)
        w_scale = jax.random.uniform(ks, (C_out,), jnp.float32, 0.01, 0.05)
        in_scale, out_scale = 0.1, 0.25
        in_zp, out_zp = 3, -5

        layer = QuantizedConv2d(weight, bias, in_zp, out_zp, in_scale, w_scale,
                                out_scale, stride, padding, dilation, groups)
        y = jax.block_until_ready(layer(x))
        y_ref = _reference(x, weight, bias, in_zp, out_zp, in_scale, w_scale,
                           out_scale, stride, padding, dilation, groups)
        assert y.shape == y_ref.shape and y.dtype == jnp.int8, name
        assert bool(jnp.all(y == y_ref)), f"mismatch vs reference: {name}"

    k1, k2, k3 = jax.random.split(key, 3)
    # Base 3x3 conv.
    run_case("base", 2, 4, 16, 16, 8, 3, 3,
             (1, 1), (1, 1), (1, 1), 1, True, k1)
    # Grouped conv with stride / dilation (locks per-channel scale ordering).
    run_case("grouped", 2, 8, 16, 16, 8, 3, 3,
             (2, 1), (1, 2), (2, 1), 2, True, k2)
    # 1x1 conv, no bias.
    run_case("pointwise_nobias", 2, 16, 8, 8, 32, 1, 1,
             (1, 1), (0, 0), (1, 1), 1, False, k3)

    print("KERNEL_OK")
</pallas_src>

<mosaic_0001>
module attributes {stable_mosaic.version = 11 : i64} {
  func.func @_qconv_gemm_kernel(%arg0: i32, %arg1: i32, %arg2: memref<1x512x128xi8, #tpu.memory_space<vmem>>, %arg3: memref<1x128x128xi8, #tpu.memory_space<vmem>>, %arg4: memref<1x1x128xi32, #tpu.memory_space<vmem>>, %arg5: memref<1x1x128xf32, #tpu.memory_space<vmem>>, %arg6: memref<1x512x128xi8, #tpu.memory_space<vmem>>) attributes {dimension_semantics = [#tpu.dimension_semantics<parallel>, #tpu.dimension_semantics<parallel>], iteration_bounds = array<i64: 1, 1>, scalar_prefetch = 0 : i64, scratch_operands = 0 : i64, tpu.core_type = #tpu.core_type<tc>, window_params = [{transform_indices = @transform_0, window_bounds = array<i64: 1, 512, 128>}, {transform_indices = @transform_1, window_bounds = array<i64: 1, 128, 128>}, {transform_indices = @transform_2, window_bounds = array<i64: 1, 1, 128>}, {transform_indices = @transform_3, window_bounds = array<i64: 1, 1, 128>}, {transform_indices = @transform_4, window_bounds = array<i64: 1, 512, 128>}]} {
    %c0 = arith.constant 0 : index
    %c0_0 = arith.constant 0 : index
    %c0_1 = arith.constant 0 : index
    %0 = vector.load %arg2[%c0, %c0_0, %c0_1] : memref<1x512x128xi8, #tpu.memory_space<vmem>>, vector<1x512x128xi8>
    %1 = vector.shape_cast %0 : vector<1x512x128xi8> to vector<512x128xi8>
    %c0_2 = arith.constant 0 : index
    %c0_3 = arith.constant 0 : index
    %c0_4 = arith.constant 0 : index
    %2 = vector.load %arg3[%c0_2, %c0_3, %c0_4] : memref<1x128x128xi8, #tpu.memory_space<vmem>>, vector<1x128x128xi8>
    %3 = vector.shape_cast %2 : vector<1x128x128xi8> to vector<128x128xi8>
    %cst = arith.constant dense<0> : vector<512x128xi32>
    %4 = tpu.matmul %1, %3, %cst {dimension_numbers = #tpu.dot_dimension_numbers<[1], [0], [0], [1], [0, 0, 1, 1], [], []>} : vector<512x128xi8>, vector<128x128xi8>, vector<512x128xi32> -> vector<512x128xi32>
    %c0_5 = arith.constant 0 : index
    %c0_6 = arith.constant 0 : index
    %c0_7 = arith.constant 0 : index
    %5 = vector.load %arg4[%c0_5, %c0_6, %c0_7] : memref<1x1x128xi32, #tpu.memory_space<vmem>>, vector<1x1x128xi32>
    %6 = vector.shape_cast %5 : vector<1x1x128xi32> to vector<1x128xi32>
    %7 = vector.broadcast %6 : vector<1x128xi32> to vector<512x128xi32>
    %8 = arith.addi %4, %7 : vector<512x128xi32>
    %9 = arith.sitofp %8 : vector<512x128xi32> to vector<512x128xf32>
    %c0_8 = arith.constant 0 : index
    %c0_9 = arith.constant 0 : index
    %c0_10 = arith.constant 0 : index
    %10 = vector.load %arg5[%c0_8, %c0_9, %c0_10] : memref<1x1x128xf32, #tpu.memory_space<vmem>>, vector<1x1x128xf32>
    %11 = vector.shape_cast %10 : vector<1x1x128xf32> to vector<1x128xf32>
    %12 = vector.broadcast %11 : vector<1x128xf32> to vector<512x128xf32>
    %13 = arith.mulf %9, %12 : vector<512x128xf32>
    %cst_11 = arith.constant -5.000000e+00 : f32
    %14 = vector.broadcast %cst_11 : f32 to vector<512x128xf32>
    %15 = arith.addf %13, %14 : vector<512x128xf32>
    %16 = math.roundeven %15 : vector<512x128xf32>
    %c-128_i32 = arith.constant -128 : i32
    %c127_i32 = arith.constant 127 : i32
    %17 = arith.sitofp %c-128_i32 : i32 to f32
    %18 = vector.broadcast %17 : f32 to vector<512x128xf32>
    %19 = arith.maximumf %18, %16 : vector<512x128xf32>
    %20 = arith.sitofp %c127_i32 : i32 to f32
    %21 = vector.broadcast %20 : f32 to vector<512x128xf32>
    %22 = arith.minimumf %21, %19 : vector<512x128xf32>
    %23 = arith.fptosi %22 : vector<512x128xf32> to vector<512x128xi8>
    %c0_12 = arith.constant 0 : index
    %c0_13 = arith.constant 0 : index
    %c0_14 = arith.constant 0 : index
    %24 = vector.load %arg6[%c0_12, %c0_13, %c0_14] : memref<1x512x128xi8, #tpu.memory_space<vmem>>, vector<1x512x128xi8>
    %25 = vector.shape_cast %24 : vector<1x512x128xi8> to vector<512x128xi8>
    %26 = vector.shape_cast %23 : vector<512x128xi8> to vector<1x512x128xi8>
    tpu.vector_store %arg6[%c0_12, %c0_13, %c0_14], %26 {strides = array<i32>} : memref<1x512x128xi8, #tpu.memory_space<vmem>>, vector<1x512x128xi8>,
    return
  }
  func.func @transform_0(%arg0: i32, %arg1: i32) -> (i32, i32, i32) {
    %c0_i32 = arith.constant 0 : i32
    %c0_i32_0 = arith.constant 0 : i32
    return %arg0, %arg1, %c0_i32 : i32, i32, i32
  }
  func.func @transform_1(%arg0: i32, %arg1: i32) -> (i32, i32, i32) {
    %c0_i32 = arith.constant 0 : i32
    %c0_i32_0 = arith.constant 0 : i32
    %c0_i32_1 = arith.constant 0 : i32
    return %arg0, %c0_i32, %c0_i32_0 : i32, i32, i32
  }
  func.func @transform_2(%arg0: i32, %arg1: i32) -> (i32, i32, i32) {
    %c0_i32 = arith.constant 0 : i32
    %c0_i32_0 = arith.constant 0 : i32
    %c0_i32_1 = arith.constant 0 : i32
    return %arg0, %c0_i32, %c0_i32_0 : i32, i32, i32
  }
  func.func @transform_3(%arg0: i32, %arg1: i32) -> (i32, i32, i32) {
    %c0_i32 = arith.constant 0 : i32
    %c0_i32_0 = arith.constant 0 : i32
    %c0_i32_1 = arith.constant 0 : i32
    return %arg0, %c0_i32, %c0_i32_0 : i32, i32, i32
  }
  func.func @transform_4(%arg0: i32, %arg1: i32) -> (i32, i32, i32) {
    %c0_i32 = arith.constant 0 : i32
    %c0_i32_0 = arith.constant 0 : i32
    return %arg0, %arg1, %c0_i32 : i32, i32, i32
  }
}

</mosaic_0001>

<llo_original>
// kernel: tpu_custom_call.1
$region0: #{tpu_custom_call.1}
  #allocation0 [shape = 'u32[]', space=smem, size = 0x4, offset = 0x4, fixed_abs, tag = 'smem constant byte address 0x4 - core index']
  #allocation1 [shape = 'u32[144,128]{1,0:T(1,128)}', space=vmem, size = 0x12000, scoped, tag = 'internal scratch']
  %s0 = inlined_call_operand.hbm [shape: s8[1,512,128], index: 0, kind: input, shape index: {}]
  %s1 = inlined_call_operand.hbm [shape: s8[1,128,128], index: 1, kind: input, shape index: {}]
  %s2 = inlined_call_operand.vmem [shape: s32[1,1,128], index: 2, kind: input, shape index: {}]
  %s3 = inlined_call_operand.vmem [shape: f32[1,1,128], index: 3, kind: input, shape index: {}]
  %s4 = inlined_call_operand.hbm [shape: s8[1,512,128], index: 4, kind: output, shape index: {}]
  %s5 = sld [smem:[#allocation0]]
  $region34: #{tpu_custom_call.1} parent=0
    _
  %s7 = ssub.s32 1, %s5
  %s8 = scalar_select 0, %s7, %s5
  $region1: #{tpu_custom_call.1} parent=0
    #allocation2 [shape = 'u8[65536]{0}', space=vmem, size = 0x10000, scoped, tag = 'input window, operand 0, single buffered']
    #allocation3 [shape = 's32[1]{0}', space=sflag, size = 0x4, scoped, tag = 'scoped memory for tpu_custom_call.1']
    #allocation4 [shape = 's32[1]{0}', space=sflag, size = 0x4, scoped, tag = 'scoped memory for tpu_custom_call.1']
    #allocation5 [shape = 'u8[16384]{0}', space=vmem, size = 0x4000, scoped, tag = 'input window, operand 1, single buffered']
    #allocation6 [shape = 's32[1]{0}', space=sflag, size = 0x4, scoped, tag = 'scoped memory for tpu_custom_call.1']
    #allocation7 [shape = 'u8[65536]{0}', space=vmem, size = 0x10000, scoped, tag = 'output window, operand 0, single buffered']
    %9 = vsyncpa [#allocation3], 0
    %10 = vsyncpa [#allocation6], 0
    %11 = vsyncpa [#allocation4], 0
    // Predicated region
    $region2: #{tpu_custom_call.1} parent=1 // pred_check
      _
    $region3: #{tpu_custom_call.1} parent=1 // pred_check_branch
      %13 = sbr.rel (0) target = $region5
    $region4: #{tpu_custom_call.1} parent=1 // pred_region
      %s15 = ssub.s32 2048, 2048
      %16 = vsyncadd [#allocation3], %s15
      %s17 = sshll.u32 [#allocation2], 4
      %s18 = int_to_ptr.vmem [resolvable:$true] %s17
      %23 = dma.hbm_to_vmem [thread:$0]  %s0, 2048, %s18, [#allocation3], 128, 128, 8
    $region5: #{tpu_custom_call.1} parent=1 // pred_fallthru
      _
    // Predicated region
    $region6: #{tpu_custom_call.1} parent=1 // pred_check
      _
    $region7: #{tpu_custom_call.1} parent=1 // pred_check_branch
      %25 = sbr.rel (0) target = $region9
    $region8: #{tpu_custom_call.1} parent=1 // pred_region
      %s27 = ssub.s32 512, 512
      %28 = vsyncadd [#allocation6], %s27
      %s29 = sshll.u32 [#allocation5], 4
      %s30 = int_to_ptr.vmem [resolvable:$true] %s29
      %35 = dma.hbm_to_vmem [thread:$0]  %s1, 512, %s30, [#allocation6], 128, 128, 8
    $region9: #{tpu_custom_call.1} parent=1 // pred_fallthru
      _
    // Predicated region
    $region10: #{tpu_custom_call.1} parent=1 // pred_check
      _
    $region11: #{tpu_custom_call.1} parent=1 // pred_check_branch
      %37 = sbr.rel (0) target = $region13
    $region12: #{tpu_custom_call.1} parent=1 // pred_region
      _
    $region13: #{tpu_custom_call.1} parent=1 // pred_fallthru
      _
    // Predicated region
    $region14: #{tpu_custom_call.1} parent=1 // pred_check
      _
    $region15: #{tpu_custom_call.1} parent=1 // pred_check_branch
      %39 = sbr.rel (0) target = $region17
    $region16: #{tpu_custom_call.1} parent=1 // pred_region
      _
    $region17: #{tpu_custom_call.1} parent=1 // pred_fallthru
      _
    // Predicated region
    $region18: #{tpu_custom_call.1} parent=1 // pred_check
      _
    $region19: #{tpu_custom_call.1} parent=1 // pred_check_branch
      %41 = sbr.rel (0) target = $region21
    $region20: #{tpu_custom_call.1} parent=1 // pred_region
      %42 = dma.done [#allocation3], 2048
    $region21: #{tpu_custom_call.1} parent=1 // pred_fallthru
      _
    // Predicated region
    $region22: #{tpu_custom_call.1} parent=1 // pred_check
      _
    $region23: #{tpu_custom_call.1} parent=1 // pred_check_branch
      %44 = sbr.rel (0) target = $region25
    $region24: #{tpu_custom_call.1} parent=1 // pred_region
      %45 = dma.done [#allocation6], 512
    $region25: #{tpu_custom_call.1} parent=1 // pred_fallthru
      _
    %v47 = vld [vmem:[#allocation2] sm:$0xff]
    %v48 = vld [vmem:[#allocation2 + $0x8] sm:$0xff]
    %v49 = vld [vmem:[#allocation2 + $0x10] sm:$0xff]
    %v50 = vld [vmem:[#allocation2 + $0x18] sm:$0xff]
    %v51 = vld [vmem:[#allocation2 + $0x20] sm:$0xff]
    %v52 = vld [vmem:[#allocation2 + $0x28] sm:$0xff]
    %v53 = vld [vmem:[#allocation2 + $0x30] sm:$0xff]
    %v54 = vld [vmem:[#allocation2 + $0x38] sm:$0xff]
    %v55 = vld [vmem:[#allocation2 + $0x40] sm:$0xff]
    %v56 = vld [vmem:[#allocation2 + $0x48] sm:$0xff]
    %v57 = vld [vmem:[#allocation2 + $0x50] sm:$0xff]
    %v58 = vld [vmem:[#allocation2 + $0x58] sm:$0xff]
    %v59 = vld [vmem:[#allocation2 + $0x60] sm:$0xff]
    %v60 = vld [vmem:[#allocation2 + $0x68] sm:$0xff]
    %v61 = vld [vmem:[#allocation2 + $0x70] sm:$0xff]
    %v62 = vld [vmem:[#allocation2 + $0x78] sm:$0xff]
    %v63 = vld [vmem:[#allocation5] sm:$0xff]
    %v64 = vld [vmem:[#allocation5 + $0x8] sm:$0xff]
    %v65 = vld [vmem:[#allocation5 + $0x10] sm:$0xff]
    %v66 = vld [vmem:[#allocation5 + $0x18] sm:$0xff]
    %v67 = vld [vmem:[%s2] sm:$0x1]
    %v68 = vlaneseq
    %v69 = vshrl.u32 %v68, 7
    %v70 = vsub.s32 0, %v69
    %v71 = vrot.slane %v67, %v70
    %72 = vmatprep.subr.s8.mxu0 0
    %73 = vmatpush1.s8.msra.mxu0 %v66
    %74 = vmatprep.subr.s8.mxu0 0
    %75 = vmatpush1.s8.msra.mxu0 %v65
    %76 = vmatprep.subr.s8.mxu0 0
    %77 = vmatpush1.s8.msra.mxu0 %v64
    %78 = vmatprep.subr.s8.mxu0 0
    %79 = vmatpush1.s8.msra.mxu0 %v63
    %80 = vmatprep.subr.s8.mxu0 0
    %81 = vmatpush2.s8.msra.mxu0 0
    %82 = vmatprep.subr.s8.mxu0 0
    %83 = vmatpush2.s8.msra.mxu0 0
    %84 = vmatprep.subr.s8.mxu0 0
    %85 = vmatpush2.s8.msra.mxu0 0
    %86 = vmatprep.subr.s8.mxu0 0
    %87 = vmatpush2.s8.msra.mxu0 0
    %88 = vmatprep.mubr.s8.mxu0 0
    %89 = vmatmul.mubr.s8.gmra.mxu0 %v47
    %v90 = vpop.s32.mrf.mxu0
    %v91 = vadd.s32 %v71, %v90
    %v92 = vpop.s32.mrf.mxu0
    %v93 = vpop.s32.mrf.mxu0
    %v94 = vadd.s32 %v71, %v93
    %v95 = vpop.s32.mrf.mxu0
    %v96 = vpop.s32.mrf.mxu0
    %v97 = vadd.s32 %v71, %v96
    %v98 = vpop.s32.mrf.mxu0
    %v99 = vpop.s32.mrf.mxu0
    %v100 = vadd.s32 %v71, %v99
    %v101 = vpop.s32.mrf.mxu0
    %102 = vmatprep.mubr.s8.mxu0 0
    %103 = vmatmul.mubr.s8.gmra.mxu0 %v48
    %v104 = vpop.s32.mrf.mxu0
    %v105 = vadd.s32 %v71, %v104
    %v106 = vpop.s32.mrf.mxu0
    %v107 = vpop.s32.mrf.mxu0
    %v108 = vadd.s32 %v71, %v107
    %v109 = vpop.s32.mrf.mxu0
    %v110 = vpop.s32.mrf.mxu0
    %v111 = vadd.s32 %v71, %v110
    %v112 = vpop.s32.mrf.mxu0
    %v113 = vpop.s32.mrf.mxu0
    %v114 = vadd.s32 %v71, %v113
    %v115 = vpop.s32.mrf.mxu0
    %116 = vmatprep.mubr.s8.mxu0 0
    %117 = vmatmul.mubr.s8.gmra.mxu0 %v49
    %v118 = vpop.s32.mrf.mxu0
    %v119 = vadd.s32 %v71, %v118
    %v120 = vpop.s32.mrf.mxu0
    %v121 = vpop.s32.mrf.mxu0
    %v122 = vadd.s32 %v71, %v121
    %v123 = vpop.s32.mrf.mxu0
    %v124 = vpop.s32.mrf.mxu0
    %v125 = vadd.s32 %v71, %v124
    %v126 = vpop.s32.mrf.mxu0
    %v127 = vpop.s32.mrf.mxu0
    %v128 = vadd.s32 %v71, %v127
    %v129 = vpop.s32.mrf.mxu0
    %130 = vmatprep.mubr.s8.mxu0 0
    %131 = vmatmul.mubr.s8.gmra.mxu0 %v50
    %v132 = vpop.s32.mrf.mxu0
    %v133 = vadd.s32 %v71, %v132
    %v134 = vpop.s32.mrf.mxu0
    %v135 = vpop.s32.mrf.mxu0
    %v136 = vadd.s32 %v71, %v135
    %v137 = vpop.s32.mrf.mxu0
    %v138 = vpop.s32.mrf.mxu0
    %v139 = vadd.s32 %v71, %v138
    %v140 = vpop.s32.mrf.mxu0
    %v141 = vpop.s32.mrf.mxu0
    %v142 = vadd.s32 %v71, %v141
    %v143 = vpop.s32.mrf.mxu0
    %144 = vmatprep.mubr.s8.mxu0 0
    %145 = vmatmul.mubr.s8.gmra.mxu0 %v51
    %v146 = vpop.s32.mrf.mxu0
    %v147 = vadd.s32 %v71, %v146
    %v148 = vpop.s32.mrf.mxu0
    %v149 = vpop.s32.mrf.mxu0
    %v150 = vadd.s32 %v71, %v149
    %v151 = vpop.s32.mrf.mxu0
    %v152 = vpop.s32.mrf.mxu0
    %v153 = vadd.s32 %v71, %v152
    %v154 = vpop.s32.mrf.mxu0
    %v155 = vpop.s32.mrf.mxu0
    %v156 = vadd.s32 %v71, %v155
    %v157 = vpop.s32.mrf.mxu0
    %158 = vmatprep.mubr.s8.mxu0 0
    %159 = vmatmul.mubr.s8.gmra.mxu0 %v52
    %v160 = vpop.s32.mrf.mxu0
    %v161 = vadd.s32 %v71, %v160
    %v162 = vpop.s32.mrf.mxu0
    %v163 = vpop.s32.mrf.mxu0
    %v164 = vadd.s32 %v71, %v163
    %v165 = vpop.s32.mrf.mxu0
    %v166 = vpop.s32.mrf.mxu0
    %v167 = vadd.s32 %v71, %v166
    %v168 = vpop.s32.mrf.mxu0
    %v169 = vpop.s32.mrf.mxu0
    %v170 = vadd.s32 %v71, %v169
    %v171 = vpop.s32.mrf.mxu0
    %172 = vmatprep.mubr.s8.mxu0 0
    %173 = vmatmul.mubr.s8.gmra.mxu0 %v53
    %v174 = vpop.s32.mrf.mxu0
    %v175 = vadd.s32 %v71, %v174
    %v176 = vpop.s32.mrf.mxu0
    %v177 = vpop.s32.mrf.mxu0
    %v178 = vadd.s32 %v71, %v177
    %v179 = vpop.s32.mrf.mxu0
    %v180 = vpop.s32.mrf.mxu0
    %v181 = vadd.s32 %v71, %v180
    %v182 = vpop.s32.mrf.mxu0
    %v183 = vpop.s32.mrf.mxu0
    %v184 = vadd.s32 %v71, %v183
    %v185 = vpop.s32.mrf.mxu0
    %186 = vmatprep.mubr.s8.mxu0 0
    %187 = vmatmul.mubr.s8.gmra.mxu0 %v54
    %v188 = vpop.s32.mrf.mxu0
    %v189 = vadd.s32 %v71, %v188
    %v190 = vpop.s32.mrf.mxu0
    %v191 = vpop.s32.mrf.mxu0
    %v192 = vadd.s32 %v71, %v191
    %v193 = vpop.s32.mrf.mxu0
    %v194 = vpop.s32.mrf.mxu0
    %v195 = vadd.s32 %v71, %v194
    %v196 = vpop.s32.mrf.mxu0
    %v197 = vpop.s32.mrf.mxu0
    %v198 = vadd.s32 %v71, %v197
    %v199 = vpop.s32.mrf.mxu0
    %200 = vmatprep.mubr.s8.mxu0 0
    %201 = vmatmul.mubr.s8.gmra.mxu0 %v55
    %v202 = vpop.s32.mrf.mxu0
    %v203 = vadd.s32 %v71, %v202
    %v204 = vpop.s32.mrf.mxu0
    %v205 = vpop.s32.mrf.mxu0
    %v206 = vadd.s32 %v71, %v205
    %v207 = vpop.s32.mrf.mxu0
    %v208 = vpop.s32.mrf.mxu0
    %v209 = vadd.s32 %v71, %v208
    %v210 = vpop.s32.mrf.mxu0
    %v211 = vpop.s32.mrf.mxu0
    %v212 = vadd.s32 %v71, %v211
    %v213 = vpop.s32.mrf.mxu0
    %214 = vmatprep.mubr.s8.mxu0 0
    %215 = vmatmul.mubr.s8.gmra.mxu0 %v56
    %v216 = vpop.s32.mrf.mxu0
    %v217 = vadd.s32 %v71, %v216
    %v218 = vpop.s32.mrf.mxu0
    %v219 = vpop.s32.mrf.mxu0
    %v220 = vadd.s32 %v71, %v219
    %v221 = vpop.s32.mrf.mxu0
    %v222 = vpop.s32.mrf.mxu0
    %v223 = vadd.s32 %v71, %v222
    %v224 = vpop.s32.mrf.mxu0
    %v225 = vpop.s32.mrf.mxu0
    %v226 = vadd.s32 %v71, %v225
    %v227 = vpop.s32.mrf.mxu0
    %228 = vmatprep.mubr.s8.mxu0 0
    %229 = vmatmul.mubr.s8.gmra.mxu0 %v57
    %v230 = vpop.s32.mrf.mxu0
    %v231 = vadd.s32 %v71, %v230
    %v232 = vpop.s32.mrf.mxu0
    %v233 = vpop.s32.mrf.mxu0
    %v234 = vadd.s32 %v71, %v233
    %v235 = vpop.s32.mrf.mxu0
    %v236 = vpop.s32.mrf.mxu0
    %v237 = vadd.s32 %v71, %v236
    %v238 = vpop.s32.mrf.mxu0
    %v239 = vpop.s32.mrf.mxu0
    %v240 = vadd.s32 %v71, %v239
    %v241 = vpop.s32.mrf.mxu0
    %242 = vmatprep.mubr.s8.mxu0 0
    %243 = vmatmul.mubr.s8.gmra.mxu0 %v58
    %v244 = vpop.s32.mrf.mxu0
    %v245 = vadd.s32 %v71, %v244
    %v246 = vpop.s32.mrf.mxu0
    %v247 = vpop.s32.mrf.mxu0
    %v248 = vadd.s32 %v71, %v247
    %v249 = vpop.s32.mrf.mxu0
    %v250 = vpop.s32.mrf.mxu0
    %v251 = vadd.s32 %v71, %v250
    %v252 = vpop.s32.mrf.mxu0
    %v253 = vpop.s32.mrf.mxu0
    %v254 = vadd.s32 %v71, %v253
    %v255 = vpop.s32.mrf.mxu0
    %256 = vmatprep.mubr.s8.mxu0 0
    %257 = vmatmul.mubr.s8.gmra.mxu0 %v59
    %v258 = vpop.s32.mrf.mxu0
    %v259 = vadd.s32 %v71, %v258
    %v260 = vpop.s32.mrf.mxu0
    %v261 = vpop.s32.mrf.mxu0
    %v262 = vadd.s32 %v71, %v261
    %v263 = vpop.s32.mrf.mxu0
    %v264 = vpop.s32.mrf.mxu0
    %v265 = vadd.s32 %v71, %v264
    %v266 = vpop.s32.mrf.mxu0
    %v267 = vpop.s32.mrf.mxu0
    %v268 = vadd.s32 %v71, %v267
    %v269 = vpop.s32.mrf.mxu0
    %270 = vmatprep.mubr.s8.mxu0 0
    %271 = vmatmul.mubr.s8.gmra.mxu0 %v60
    %v272 = vpop.s32.mrf.mxu0
    %v273 = vadd.s32 %v71, %v272
    %v274 = vpop.s32.mrf.mxu0
    %v275 = vpop.s32.mrf.mxu0
    %v276 = vadd.s32 %v71, %v275
    %v277 = vpop.s32.mrf.mxu0
    %v278 = vpop.s32.mrf.mxu0
    %v279 = vadd.s32 %v71, %v278
    %v280 = vpop.s32.mrf.mxu0
    %v281 = vpop.s32.mrf.mxu0
    %v282 = vadd.s32 %v71, %v281
    %v283 = vpop.s32.mrf.mxu0
    %284 = vmatprep.mubr.s8.mxu0 0
    %285 = vmatmul.mubr.s8.gmra.mxu0 %v61
    %v286 = vpop.s32.mrf.mxu0
    %v287 = vadd.s32 %v71, %v286
    %v288 = vpop.s32.mrf.mxu0
    %v289 = vpop.s32.mrf.mxu0
    %v290 = vadd.s32 %v71, %v289
    %v291 = vpop.s32.mrf.mxu0
    %v292 = vpop.s32.mrf.mxu0
    %v293 = vadd.s32 %v71, %v292
    %v294 = vpop.s32.mrf.mxu0
    %v295 = vpop.s32.mrf.mxu0
    %v296 = vadd.s32 %v71, %v295
    %v297 = vpop.s32.mrf.mxu0
    %298 = vmatprep.mubr.s8.mxu0 0
    %299 = vmatmul.mubr.s8.gmra.mxu0 %v62
    %v300 = vpop.s32.mrf.mxu0
    %v301 = vadd.s32 %v71, %v300
    %v302 = vpop.s32.mrf.mxu0
    %v303 = vpop.s32.mrf.mxu0
    %v304 = vadd.s32 %v71, %v303
    %v305 = vpop.s32.mrf.mxu0
    %v306 = vpop.s32.mrf.mxu0
    %v307 = vadd.s32 %v71, %v306
    %v308 = vpop.s32.mrf.mxu0
    %v309 = vpop.s32.mrf.mxu0
    %v310 = vadd.s32 %v71, %v309
    %v311 = vpop.s32.mrf.mxu0
    %312 = vdwg.mxu0
    %v313 = vcvt.s32.f32 %v91
    %v314 = vcvt.s32.f32 %v94
    %v315 = vcvt.s32.f32 %v97
    %v316 = vcvt.s32.f32 %v100
    %v317 = vcvt.s32.f32 %v105
    %v318 = vcvt.s32.f32 %v108
    %v319 = vcvt.s32.f32 %v111
    %v320 = vcvt.s32.f32 %v114
    %v321 = vcvt.s32.f32 %v119
    %v322 = vcvt.s32.f32 %v122
    %v323 = vcvt.s32.f32 %v125
    %v324 = vcvt.s32.f32 %v128
    %v325 = vcvt.s32.f32 %v133
    %v326 = vcvt.s32.f32 %v136
    %v327 = vcvt.s32.f32 %v139
    %v328 = vcvt.s32.f32 %v142
    %v329 = vcvt.s32.f32 %v147
    %v330 = vcvt.s32.f32 %v150
    %v331 = vcvt.s32.f32 %v153
    %v332 = vcvt.s32.f32 %v156
    %v333 = vcvt.s32.f32 %v161
    %v334 = vcvt.s32.f32 %v164
    %v335 = vcvt.s32.f32 %v167
    %v336 = vcvt.s32.f32 %v170
    %v337 = vcvt.s32.f32 %v175
    %v338 = vcvt.s32.f32 %v178
    %v339 = vcvt.s32.f32 %v181
    %v340 = vcvt.s32.f32 %v184
    %v341 = vcvt.s32.f32 %v189
    %v342 = vcvt.s32.f32 %v192
    %v343 = vcvt.s32.f32 %v195
    %v344 = vcvt.s32.f32 %v198
    %v345 = vcvt.s32.f32 %v203
    %v346 = vcvt.s32.f32 %v206
    %v347 = vcvt.s32.f32 %v209
    %v348 = vcvt.s32.f32 %v212
    %v349 = vcvt.s32.f32 %v217
    %v350 = vcvt.s32.f32 %v220
    %v351 = vcvt.s32.f32 %v223
    %v352 = vcvt.s32.f32 %v226
    %v353 = vcvt.s32.f32 %v231
    %v354 = vcvt.s32.f32 %v234
    %v355 = vcvt.s32.f32 %v237
    %v356 = vcvt.s32.f32 %v240
    %v357 = vcvt.s32.f32 %v245
    %v358 = vcvt.s32.f32 %v248
    %v359 = vcvt.s32.f32 %v251
    %v360 = vcvt.s32.f32 %v254
    %v361 = vcvt.s32.f32 %v259
    %v362 = vcvt.s32.f32 %v262
    %v363 = vcvt.s32.f32 %v265
    %v364 = vcvt.s32.f32 %v268
    %v365 = vcvt.s32.f32 %v273
    %v366 = vcvt.s32.f32 %v276
    %v367 = vcvt.s32.f32 %v279
    %v368 = vcvt.s32.f32 %v282
    %v369 = vcvt.s32.f32 %v287
    %v370 = vcvt.s32.f32 %v290
    %v371 = vcvt.s32.f32 %v293
    %v372 = vcvt.s32.f32 %v296
    %v373 = vcvt.s32.f32 %v301
    %v374 = vcvt.s32.f32 %v304
    %v375 = vcvt.s32.f32 %v307
    %v376 = vcvt.s32.f32 %v310
    %v377 = vld [vmem:[%s3] sm:$0x1]
    %v379 = vlaneseq
    %v380 = vshrl.u32 %v379, 7
    %v381 = vsub.s32 0, %v380
    %v382 = vrot.slane %v377, %v381
    %v384 = vmul.f32 %v313, %v382
    %v385 = vmul.f32 %v314, %v382
    %v386 = vmul.f32 %v315, %v382
    %v387 = vmul.f32 %v316, %v382
    %v388 = vmul.f32 %v317, %v382
    %v389 = vmul.f32 %v318, %v382
    %v390 = vmul.f32 %v319, %v382
    %v391 = vmul.f32 %v320, %v382
    %v392 = vmul.f32 %v321, %v382
    %v393 = vmul.f32 %v322, %v382
    %v394 = vmul.f32 %v323, %v382
    %v395 = vmul.f32 %v324, %v382
    %v396 = vmul.f32 %v325, %v382
    %v397 = vmul.f32 %v326, %v382
    %v398 = vmul.f32 %v327, %v382
    %v399 = vmul.f32 %v328, %v382
    %v400 = vmul.f32 %v329, %v382
    %v401 = vmul.f32 %v330, %v382
    %v402 = vmul.f32 %v331, %v382
    %v403 = vmul.f32 %v332, %v382
    %v404 = vmul.f32 %v333, %v382
    %v405 = vmul.f32 %v334, %v382
    %v406 = vmul.f32 %v335, %v382
    %v407 = vmul.f32 %v336, %v382
    %v408 = vmul.f32 %v337, %v382
    %v409 = vmul.f32 %v338, %v382
    %v410 = vmul.f32 %v339, %v382
    %v411 = vmul.f32 %v340, %v382
    %v412 = vmul.f32 %v341, %v382
    %v413 = vmul.f32 %v342, %v382
    %v414 = vmul.f32 %v343, %v382
    %v415 = vmul.f32 %v344, %v382
    %v416 = vmul.f32 %v345, %v382
    %v417 = vmul.f32 %v346, %v382
    %v418 = vmul.f32 %v347, %v382
    %v419 = vmul.f32 %v348, %v382
    %v420 = vmul.f32 %v349, %v382
    %v421 = vmul.f32 %v350, %v382
    %v422 = vmul.f32 %v351, %v382
    %v423 = vmul.f32 %v352, %v382
    %v424 = vmul.f32 %v353, %v382
    %v425 = vmul.f32 %v354, %v382
    %v426 = vmul.f32 %v355, %v382
    %v427 = vmul.f32 %v356, %v382
    %v428 = vmul.f32 %v357, %v382
    %v429 = vmul.f32 %v358, %v382
    %v430 = vmul.f32 %v359, %v382
    %v431 = vmul.f32 %v360, %v382
    %v432 = vmul.f32 %v361, %v382
    %v433 = vmul.f32 %v362, %v382
    %v434 = vmul.f32 %v363, %v382
    %v435 = vmul.f32 %v364, %v382
    %v436 = vmul.f32 %v365, %v382
    %v437 = vmul.f32 %v366, %v382
    %v438 = vmul.f32 %v367, %v382
    %v439 = vmul.f32 %v368, %v382
    %v440 = vmul.f32 %v369, %v382
    %v441 = vmul.f32 %v370, %v382
    %v442 = vmul.f32 %v371, %v382
    %v443 = vmul.f32 %v372, %v382
    %v444 = vmul.f32 %v373, %v382
    %v445 = vmul.f32 %v374, %v382
    %v446 = vmul.f32 %v375, %v382
    %v447 = vmul.f32 %v376, %v382
    %v448 = vadd.f32 %v384, -5.0
    %v449 = vadd.f32 %v385, -5.0
    %v450 = vadd.f32 %v386, -5.0
    %v451 = vadd.f32 %v387, -5.0
    %v452 = vadd.f32 %v388, -5.0
    %v453 = vadd.f32 %v389, -5.0
    %v454 = vadd.f32 %v390, -5.0
    %v455 = vadd.f32 %v391, -5.0
    %v456 = vadd.f32 %v392, -5.0
    %v457 = vadd.f32 %v393, -5.0
    %v458 = vadd.f32 %v394, -5.0
    %v459 = vadd.f32 %v395, -5.0
    %v460 = vadd.f32 %v396, -5.0
    %v461 = vadd.f32 %v397, -5.0
    %v462 = vadd.f32 %v398, -5.0
    %v463 = vadd.f32 %v399, -5.0
    %v464 = vadd.f32 %v400, -5.0
    %v465 = vadd.f32 %v401, -5.0
    %v466 = vadd.f32 %v402, -5.0
    %v467 = vadd.f32 %v403, -5.0
    %v468 = vadd.f32 %v404, -5.0
    %v469 = vadd.f32 %v405, -5.0
    %v470 = vadd.f32 %v406, -5.0
    %v471 = vadd.f32 %v407, -5.0
    %v472 = vadd.f32 %v408, -5.0
    %v473 = vadd.f32 %v409, -5.0
    %v474 = vadd.f32 %v410, -5.0
    %v475 = vadd.f32 %v411, -5.0
    %v476 = vadd.f32 %v412, -5.0
    %v477 = vadd.f32 %v413, -5.0
    %v478 = vadd.f32 %v414, -5.0
    %v479 = vadd.f32 %v415, -5.0
    %v480 = vadd.f32 %v416, -5.0
    %v481 = vadd.f32 %v417, -5.0
    %v482 = vadd.f32 %v418, -5.0
    %v483 = vadd.f32 %v419, -5.0
    %v484 = vadd.f32 %v420, -5.0
    %v485 = vadd.f32 %v421, -5.0
    %v486 = vadd.f32 %v422, -5.0
    %v487 = vadd.f32 %v423, -5.0
    %v488 = vadd.f32 %v424, -5.0
    %v489 = vadd.f32 %v425, -5.0
    %v490 = vadd.f32 %v426, -5.0
    %v491 = vadd.f32 %v427, -5.0
    %v492 = vadd.f32 %v428, -5.0
    %v493 = vadd.f32 %v429, -5.0
    %v494 = vadd.f32 %v430, -5.0
    %v495 = vadd.f32 %v431, -5.0
    %v496 = vadd.f32 %v432, -5.0
    %v497 = vadd.f32 %v433, -5.0
    %v498 = vadd.f32 %v434, -5.0
    %v499 = vadd.f32 %v435, -5.0
    %v500 = vadd.f32 %v436, -5.0
    %v501 = vadd.f32 %v437, -5.0
    %v502 = vadd.f32 %v438, -5.0
    %v503 = vadd.f32 %v439, -5.0
    %v504 = vadd.f32 %v440, -5.0
    %v505 = vadd.f32 %v441, -5.0
    %v506 = vadd.f32 %v442, -5.0
    %v507 = vadd.f32 %v443, -5.0
    %v508 = vadd.f32 %v444, -5.0
    %v509 = vadd.f32 %v445, -5.0
    %v510 = vadd.f32 %v446, -5.0
    %v511 = vadd.f32 %v447, -5.0
    %v512 = vround.ne.pseudo %v448
    %v513 = vround.ne.pseudo %v449
    %v514 = vround.ne.pseudo %v450
    %v515 = vround.ne.pseudo %v451
    %v516 = vround.ne.pseudo %v452
    %v517 = vround.ne.pseudo %v453
    %v518 = vround.ne.pseudo %v454
    %v519 = vround.ne.pseudo %v455
    %v520 = vround.ne.pseudo %v456
    %v521 = vround.ne.pseudo %v457
    %v522 = vround.ne.pseudo %v458
    %v523 = vround.ne.pseudo %v459
    %v524 = vround.ne.pseudo %v460
    %v525 = vround.ne.pseudo %v461
    %v526 = vround.ne.pseudo %v462
    %v527 = vround.ne.pseudo %v463
    %v528 = vround.ne.pseudo %v464
    %v529 = vround.ne.pseudo %v465
    %v530 = vround.ne.pseudo %v466
    %v531 = vround.ne.pseudo %v467
    %v532 = vround.ne.pseudo %v468
    %v533 = vround.ne.pseudo %v469
    %v534 = vround.ne.pseudo %v470
    %v535 = vround.ne.pseudo %v471
    %v536 = vround.ne.pseudo %v472
    %v537 = vround.ne.pseudo %v473
    %v538 = vround.ne.pseudo %v474
    %v539 = vround.ne.pseudo %v475
    %v540 = vround.ne.pseudo %v476
    %v541 = vround.ne.pseudo %v477
    %v542 = vround.ne.pseudo %v478
    %v543 = vround.ne.pseudo %v479
    %v544 = vround.ne.pseudo %v480
    %v545 = vround.ne.pseudo %v481
    %v546 = vround.ne.pseudo %v482
    %v547 = vround.ne.pseudo %v483
    %v548 = vround.ne.pseudo %v484
    %v549 = vround.ne.pseudo %v485
    %v550 = vround.ne.pseudo %v486
    %v551 = vround.ne.pseudo %v487
    %v552 = vround.ne.pseudo %v488
    %v553 = vround.ne.pseudo %v489
    %v554 = vround.ne.pseudo %v490
    %v555 = vround.ne.pseudo %v491
    %v556 = vround.ne.pseudo %v492
    %v557 = vround.ne.pseudo %v493
    %v558 = vround.ne.pseudo %v494
    %v559 = vround.ne.pseudo %v495
    %v560 = vround.ne.pseudo %v496
    %v561 = vround.ne.pseudo %v497
    %v562 = vround.ne.pseudo %v498
    %v563 = vround.ne.pseudo %v499
    %v564 = vround.ne.pseudo %v500
    %v565 = vround.ne.pseudo %v501
    %v566 = vround.ne.pseudo %v502
    %v567 = vround.ne.pseudo %v503
    %v568 = vround.ne.pseudo %v504
    %v569 = vround.ne.pseudo %v505
    %v570 = vround.ne.pseudo %v506
    %v571 = vround.ne.pseudo %v507
    %v572 = vround.ne.pseudo %v508
    %v573 = vround.ne.pseudo %v509
    %v574 = vround.ne.pseudo %v510
    %v575 = vround.ne.pseudo %v511
    %v576 = vmax.f32 %v512, -128.0
    %v577 = vmax.f32 %v513, -128.0
    %v578 = vmax.f32 %v514, -128.0
    %v579 = vmax.f32 %v515, -128.0
    %v580 = vmax.f32 %v516, -128.0
    %v581 = vmax.f32 %v517, -128.0
    %v582 = vmax.f32 %v518, -128.0
    %v583 = vmax.f32 %v519, -128.0
    %v584 = vmax.f32 %v520, -128.0
    %v585 = vmax.f32 %v521, -128.0
    %v586 = vmax.f32 %v522, -128.0
    %v587 = vmax.f32 %v523, -128.0
    %v588 = vmax.f32 %v524, -128.0
    %v589 = vmax.f32 %v525, -128.0
    %v590 = vmax.f32 %v526, -128.0
    %v591 = vmax.f32 %v527, -128.0
    %v592 = vmax.f32 %v528, -128.0
    %v593 = vmax.f32 %v529, -128.0
    %v594 = vmax.f32 %v530, -128.0
    %v595 = vmax.f32 %v531, -128.0
    %v596 = vmax.f32 %v532, -128.0
    %v597 = vmax.f32 %v533, -128.0
    %v598 = vmax.f32 %v534, -128.0
    %v599 = vmax.f32 %v535, -128.0
    %v600 = vmax.f32 %v536, -128.0
    %v601 = vmax.f32 %v537, -128.0
    %v602 = vmax.f32 %v538, -128.0
    %v603 = vmax.f32 %v539, -128.0
    %v604 = vmax.f32 %v540, -128.0
    %v605 = vmax.f32 %v541, -128.0
    %v606 = vmax.f32 %v542, -128.0
    %v607 = vmax.f32 %v543, -128.0
    %v608 = vmax.f32 %v544, -128.0
    %v609 = vmax.f32 %v545, -128.0
    %v610 = vmax.f32 %v546, -128.0
    %v611 = vmax.f32 %v547, -128.0
    %v612 = vmax.f32 %v548, -128.0
    %v613 = vmax.f32 %v549, -128.0
    %v614 = vmax.f32 %v550, -128.0
    %v615 = vmax.f32 %v551, -128.0
    %v616 = vmax.f32 %v552, -128.0
    %v617 = vmax.f32 %v553, -128.0
    %v618 = vmax.f32 %v554, -128.0
    %v619 = vmax.f32 %v555, -128.0
    %v620 = vmax.f32 %v556, -128.0
    %v621 = vmax.f32 %v557, -128.0
    %v622 = vmax.f32 %v558, -128.0
    %v623 = vmax.f32 %v559, -128.0
    %v624 = vmax.f32 %v560, -128.0
    %v625 = vmax.f32 %v561, -128.0
    %v626 = vmax.f32 %v562, -128.0
    %v627 = vmax.f32 %v563, -128.0
    %v628 = vmax.f32 %v564, -128.0
    %v629 = vmax.f32 %v565, -128.0
    %v630 = vmax.f32 %v566, -128.0
    %v631 = vmax.f32 %v567, -128.0
    %v632 = vmax.f32 %v568, -128.0
    %v633 = vmax.f32 %v569, -128.0
    %v634 = vmax.f32 %v570, -128.0
    %v635 = vmax.f32 %v571, -128.0
    %v636 = vmax.f32 %v572, -128.0
    %v637 = vmax.f32 %v573, -128.0
    %v638 = vmax.f32 %v574, -128.0
    %v639 = vmax.f32 %v575, -128.0
    %v640 = vmin.f32 %v576, 127.0
    %v641 = vmin.f32 %v577, 127.0
    %v642 = vmin.f32 %v578, 127.0
    %v643 = vmin.f32 %v579, 127.0
    %v644 = vmin.f32 %v580, 127.0
    %v645 = vmin.f32 %v581, 127.0
    %v646 = vmin.f32 %v582, 127.0
    %v647 = vmin.f32 %v583, 127.0
    %v648 = vmin.f32 %v584, 127.0
    %v649 = vmin.f32 %v585, 127.0
    %v650 = vmin.f32 %v586, 127.0
    %v651 = vmin.f32 %v587, 127.0
    %v652 = vmin.f32 %v588, 127.0
    %v653 = vmin.f32 %v589, 127.0
    %v654 = vmin.f32 %v590, 127.0
    %v655 = vmin.f32 %v591, 127.0
    %v656 = vmin.f32 %v592, 127.0
    %v657 = vmin.f32 %v593, 127.0
    %v658 = vmin.f32 %v594, 127.0
    %v659 = vmin.f32 %v595, 127.0
    %v660 = vmin.f32 %v596, 127.0
    %v661 = vmin.f32 %v597, 127.0
    %v662 = vmin.f32 %v598, 127.0
    %v663 = vmin.f32 %v599, 127.0
    %v664 = vmin.f32 %v600, 127.0
    %v665 = vmin.f32 %v601, 127.0
    %v666 = vmin.f32 %v602, 127.0
    %v667 = vmin.f32 %v603, 127.0
    %v668 = vmin.f32 %v604, 127.0
    %v669 = vmin.f32 %v605, 127.0
    %v670 = vmin.f32 %v606, 127.0
    %v671 = vmin.f32 %v607, 127.0
    %v672 = vmin.f32 %v608, 127.0
    %v673 = vmin.f32 %v609, 127.0
    %v674 = vmin.f32 %v610, 127.0
    %v675 = vmin.f32 %v611, 127.0
    %v676 = vmin.f32 %v612, 127.0
    %v677 = vmin.f32 %v613, 127.0
    %v678 = vmin.f32 %v614, 127.0
    %v679 = vmin.f32 %v615, 127.0
    %v680 = vmin.f32 %v616, 127.0
    %v681 = vmin.f32 %v617, 127.0
    %v682 = vmin.f32 %v618, 127.0
    %v683 = vmin.f32 %v619, 127.0
    %v684 = vmin.f32 %v620, 127.0
    %v685 = vmin.f32 %v621, 127.0
    %v686 = vmin.f32 %v622, 127.0
    %v687 = vmin.f32 %v623, 127.0
    %v688 = vmin.f32 %v624, 127.0
    %v689 = vmin.f32 %v625, 127.0
    %v690 = vmin.f32 %v626, 127.0
    %v691 = vmin.f32 %v627, 127.0
    %v692 = vmin.f32 %v628, 127.0
    %v693 = vmin.f32 %v629, 127.0
    %v694 = vmin.f32 %v630, 127.0
    %v695 = vmin.f32 %v631, 127.0
    %v696 = vmin.f32 %v632, 127.0
    %v697 = vmin.f32 %v633, 127.0
    %v698 = vmin.f32 %v634, 127.0
    %v699 = vmin.f32 %v635, 127.0
    %v700 = vmin.f32 %v636, 127.0
    %v701 = vmin.f32 %v637, 127.0
    %v702 = vmin.f32 %v638, 127.0
    %v703 = vmin.f32 %v639, 127.0
    %v704 = vmax.f32 %v640, -128.0
    %v705 = vmax.f32 %v641, -128.0
    %v706 = vmax.f32 %v642, -128.0
    %v707 = vmax.f32 %v643, -128.0
    %v708 = vmax.f32 %v644, -128.0
    %v709 = vmax.f32 %v645, -128.0
    %v710 = vmax.f32 %v646, -128.0
    %v711 = vmax.f32 %v647, -128.0
    %v712 = vmax.f32 %v648, -128.0
    %v713 = vmax.f32 %v649, -128.0
    %v714 = vmax.f32 %v650, -128.0
    %v715 = vmax.f32 %v651, -128.0
    %v716 = vmax.f32 %v652, -128.0
    %v717 = vmax.f32 %v653, -128.0
    %v718 = vmax.f32 %v654, -128.0
    %v719 = vmax.f32 %v655, -128.0
    %v720 = vmax.f32 %v656, -128.0
    %v721 = vmax.f32 %v657, -128.0
    %v722 = vmax.f32 %v658, -128.0
    %v723 = vmax.f32 %v659, -128.0
    %v724 = vmax.f32 %v660, -128.0
    %v725 = vmax.f32 %v661, -128.0
    %v726 = vmax.f32 %v662, -128.0
    %v727 = vmax.f32 %v663, -128.0
    %v728 = vmax.f32 %v664, -128.0
    %v729 = vmax.f32 %v665, -128.0
    %v730 = vmax.f32 %v666, -128.0
    %v731 = vmax.f32 %v667, -128.0
    %v732 = vmax.f32 %v668, -128.0
    %v733 = vmax.f32 %v669, -128.0
    %v734 = vmax.f32 %v670, -128.0
    %v735 = vmax.f32 %v671, -128.0
    %v736 = vmax.f32 %v672, -128.0
    %v737 = vmax.f32 %v673, -128.0
    %v738 = vmax.f32 %v674, -128.0
    %v739 = vmax.f32 %v675, -128.0
    %v740 = vmax.f32 %v676, -128.0
    %v741 = vmax.f32 %v677, -128.0
    %v742 = vmax.f32 %v678, -128.0
    %v743 = vmax.f32 %v679, -128.0
    %v744 = vmax.f32 %v680, -128.0
    %v745 = vmax.f32 %v681, -128.0
    %v746 = vmax.f32 %v682, -128.0
    %v747 = vmax.f32 %v683, -128.0
    %v748 = vmax.f32 %v684, -128.0
    %v749 = vmax.f32 %v685, -128.0
    %v750 = vmax.f32 %v686, -128.0
    %v751 = vmax.f32 %v687, -128.0
    %v752 = vmax.f32 %v688, -128.0
    %v753 = vmax.f32 %v689, -128.0
    %v754 = vmax.f32 %v690, -128.0
    %v755 = vmax.f32 %v691, -128.0
    %v756 = vmax.f32 %v692, -128.0
    %v757 = vmax.f32 %v693, -128.0
    %v758 = vmax.f32 %v694, -128.0
    %v759 = vmax.f32 %v695, -128.0
    %v760 = vmax.f32 %v696, -128.0
    %v761 = vmax.f32 %v697, -128.0
    %v762 = vmax.f32 %v698, -128.0
    %v763 = vmax.f32 %v699, -128.0
    %v764 = vmax.f32 %v700, -128.0
    %v765 = vmax.f32 %v701, -128.0
    %v766 = vmax.f32 %v702, -128.0
    %v767 = vmax.f32 %v703, -128.0
    %v768 = vmin.f32 %v704, 127.0
    %v769 = vmin.f32 %v705, 127.0
    %v770 = vmin.f32 %v706, 127.0
    %v771 = vmin.f32 %v707, 127.0
    %v772 = vmin.f32 %v708, 127.0
    %v773 = vmin.f32 %v709, 127.0
    %v774 = vmin.f32 %v710, 127.0
    %v775 = vmin.f32 %v711, 127.0
    %v776 = vmin.f32 %v712, 127.0
    %v777 = vmin.f32 %v713, 127.0
    %v778 = vmin.f32 %v714, 127.0
    %v779 = vmin.f32 %v715, 127.0
    %v780 = vmin.f32 %v716, 127.0
    %v781 = vmin.f32 %v717, 127.0
    %v782 = vmin.f32 %v718, 127.0
    %v783 = vmin.f32 %v719, 127.0
    %v784 = vmin.f32 %v720, 127.0
    %v785 = vmin.f32 %v721, 127.0
    %v786 = vmin.f32 %v722, 127.0
    %v787 = vmin.f32 %v723, 127.0
    %v788 = vmin.f32 %v724, 127.0
    %v789 = vmin.f32 %v725, 127.0
    %v790 = vmin.f32 %v726, 127.0
    %v791 = vmin.f32 %v727, 127.0
    %v792 = vmin.f32 %v728, 127.0
    %v793 = vmin.f32 %v729, 127.0
    %v794 = vmin.f32 %v730, 127.0
    %v795 = vmin.f32 %v731, 127.0
    %v796 = vmin.f32 %v732, 127.0
    %v797 = vmin.f32 %v733, 127.0
    %v798 = vmin.f32 %v734, 127.0
    %v799 = vmin.f32 %v735, 127.0
    %v800 = vmin.f32 %v736, 127.0
    %v801 = vmin.f32 %v737, 127.0
    %v802 = vmin.f32 %v738, 127.0
    %v803 = vmin.f32 %v739, 127.0
    %v804 = vmin.f32 %v740, 127.0
    %v805 = vmin.f32 %v741, 127.0
    %v806 = vmin.f32 %v742, 127.0
    %v807 = vmin.f32 %v743, 127.0
    %v808 = vmin.f32 %v744, 127.0
    %v809 = vmin.f32 %v745, 127.0
    %v810 = vmin.f32 %v746, 127.0
    %v811 = vmin.f32 %v747, 127.0
    %v812 = vmin.f32 %v748, 127.0
    %v813 = vmin.f32 %v749, 127.0
    %v814 = vmin.f32 %v750, 127.0
    %v815 = vmin.f32 %v751, 127.0
    %v816 = vmin.f32 %v752, 127.0
    %v817 = vmin.f32 %v753, 127.0
    %v818 = vmin.f32 %v754, 127.0
    %v819 = vmin.f32 %v755, 127.0
    %v820 = vmin.f32 %v756, 127.0
    %v821 = vmin.f32 %v757, 127.0
    %v822 = vmin.f32 %v758, 127.0
    %v823 = vmin.f32 %v759, 127.0
    %v824 = vmin.f32 %v760, 127.0
    %v825 = vmin.f32 %v761, 127.0
    %v826 = vmin.f32 %v762, 127.0
    %v827 = vmin.f32 %v763, 127.0
    %v828 = vmin.f32 %v764, 127.0
    %v829 = vmin.f32 %v765, 127.0
    %v830 = vmin.f32 %v766, 127.0
    %v831 = vmin.f32 %v767, 127.0
    %v832 = vcvt.f32.s32.to.zero.pseudo %v768
    %v833 = vcvt.f32.s32.to.zero.pseudo %v769
    %v834 = vcvt.f32.s32.to.zero.pseudo %v770
    %v835 = vcvt.f32.s32.to.zero.pseudo %v771
    %v836 = vcvt.f32.s32.to.zero.pseudo %v772
    %v837 = vcvt.f32.s32.to.zero.pseudo %v773
    %v838 = vcvt.f32.s32.to.zero.pseudo %v774
    %v839 = vcvt.f32.s32.to.zero.pseudo %v775
    %v840 = vcvt.f32.s32.to.zero.pseudo %v776
    %v841 = vcvt.f32.s32.to.zero.pseudo %v777
    %v842 = vcvt.f32.s32.to.zero.pseudo %v778
    %v843 = vcvt.f32.s32.to.zero.pseudo %v779
    %v844 = vcvt.f32.s32.to.zero.pseudo %v780
    %v845 = vcvt.f32.s32.to.zero.pseudo %v781
    %v846 = vcvt.f32.s32.to.zero.pseudo %v782
    %v847 = vcvt.f32.s32.to.zero.pseudo %v783
    %v848 = vcvt.f32.s32.to.zero.pseudo %v784
    %v849 = vcvt.f32.s32.to.zero.pseudo %v785
    %v850 = vcvt.f32.s32.to.zero.pseudo %v786
    %v851 = vcvt.f32.s32.to.zero.pseudo %v787
    %v852 = vcvt.f32.s32.to.zero.pseudo %v788
    %v853 = vcvt.f32.s32.to.zero.pseudo %v789
    %v854 = vcvt.f32.s32.to.zero.pseudo %v790
    %v855 = vcvt.f32.s32.to.zero.pseudo %v791
    %v856 = vcvt.f32.s32.to.zero.pseudo %v792
    %v857 = vcvt.f32.s32.to.zero.pseudo %v793
    %v858 = vcvt.f32.s32.to.zero.pseudo %v794
    %v859 = vcvt.f32.s32.to.zero.pseudo %v795
    %v860 = vcvt.f32.s32.to.zero.pseudo %v796
    %v861 = vcvt.f32.s32.to.zero.pseudo %v797
    %v862 = vcvt.f32.s32.to.zero.pseudo %v798
    %v863 = vcvt.f32.s32.to.zero.pseudo %v799
    %v864 = vcvt.f32.s32.to.zero.pseudo %v800
    %v865 = vcvt.f32.s32.to.zero.pseudo %v801
    %v866 = vcvt.f32.s32.to.zero.pseudo %v802
    %v867 = vcvt.f32.s32.to.zero.pseudo %v803
    %v868 = vcvt.f32.s32.to.zero.pseudo %v804
    %v869 = vcvt.f32.s32.to.zero.pseudo %v805
    %v870 = vcvt.f32.s32.to.zero.pseudo %v806
    %v871 = vcvt.f32.s32.to.zero.pseudo %v807
    %v872 = vcvt.f32.s32.to.zero.pseudo %v808
    %v873 = vcvt.f32.s32.to.zero.pseudo %v809
    %v874 = vcvt.f32.s32.to.zero.pseudo %v810
    %v875 = vcvt.f32.s32.to.zero.pseudo %v811
    %v876 = vcvt.f32.s32.to.zero.pseudo %v812
    %v877 = vcvt.f32.s32.to.zero.pseudo %v813
    %v878 = vcvt.f32.s32.to.zero.pseudo %v814
    %v879 = vcvt.f32.s32.to.zero.pseudo %v815
    %v880 = vcvt.f32.s32.to.zero.pseudo %v816
    %v881 = vcvt.f32.s32.to.zero.pseudo %v817
    %v882 = vcvt.f32.s32.to.zero.pseudo %v818
    %v883 = vcvt.f32.s32.to.zero.pseudo %v819
    %v884 = vcvt.f32.s32.to.zero.pseudo %v820
    %v885 = vcvt.f32.s32.to.zero.pseudo %v821
    %v886 = vcvt.f32.s32.to.zero.pseudo %v822
    %v887 = vcvt.f32.s32.to.zero.pseudo %v823
    %v888 = vcvt.f32.s32.to.zero.pseudo %v824
    %v889 = vcvt.f32.s32.to.zero.pseudo %v825
    %v890 = vcvt.f32.s32.to.zero.pseudo %v826
    %v891 = vcvt.f32.s32.to.zero.pseudo %v827
    %v892 = vcvt.f32.s32.to.zero.pseudo %v828
    %v893 = vcvt.f32.s32.to.zero.pseudo %v829
    %v894 = vcvt.f32.s32.to.zero.pseudo %v830
    %v895 = vcvt.f32.s32.to.zero.pseudo %v831
    %v896 = vpack.c.b16 %v833, %v832
    %v897 = vpack.c.b16 %v835, %v834
    %v898 = vpack.c.b8 %v897, %v896
    %v899 = vpack.c.b16 %v837, %v836
    %v900 = vpack.c.b16 %v839, %v838
    %v901 = vpack.c.b8 %v900, %v899
    %v902 = vpack.c.b16 %v841, %v840
    %v903 = vpack.c.b16 %v843, %v842
    %v904 = vpack.c.b8 %v903, %v902
    %v905 = vpack.c.b16 %v845, %v844
    %v906 = vpack.c.b16 %v847, %v846
    %v907 = vpack.c.b8 %v906, %v905
    %v908 = vpack.c.b16 %v849, %v848
    %v909 = vpack.c.b16 %v851, %v850
    %v910 = vpack.c.b8 %v909, %v908
    %v911 = vpack.c.b16 %v853, %v852
    %v912 = vpack.c.b16 %v855, %v854
    %v913 = vpack.c.b8 %v912, %v911
    %v914 = vpack.c.b16 %v857, %v856
    %v915 = vpack.c.b16 %v859, %v858
    %v916 = vpack.c.b8 %v915, %v914
    %v917 = vpack.c.b16 %v861, %v860
    %v918 = vpack.c.b16 %v863, %v862
    %v919 = vpack.c.b8 %v918, %v917
    %v920 = vpack.c.b16 %v865, %v864
    %v921 = vpack.c.b16 %v867, %v866
    %v922 = vpack.c.b8 %v921, %v920
    %v923 = vpack.c.b16 %v869, %v868
    %v924 = vpack.c.b16 %v871, %v870
    %v925 = vpack.c.b8 %v924, %v923
    %v926 = vpack.c.b16 %v873, %v872
    %v927 = vpack.c.b16 %v875, %v874
    %v928 = vpack.c.b8 %v927, %v926
    %v929 = vpack.c.b16 %v877, %v876
    %v930 = vpack.c.b16 %v879, %v878
    %v931 = vpack.c.b8 %v930, %v929
    %v932 = vpack.c.b16 %v881, %v880
    %v933 = vpack.c.b16 %v883, %v882
    %v934 = vpack.c.b8 %v933, %v932
    %v935 = vpack.c.b16 %v885, %v884
    %v936 = vpack.c.b16 %v887, %v886
    %v937 = vpack.c.b8 %v936, %v935
    %v938 = vpack.c.b16 %v889, %v888
    %v939 = vpack.c.b16 %v891, %v890
    %v940 = vpack.c.b8 %v939, %v938
    %v941 = vpack.c.b16 %v893, %v892
    %v942 = vpack.c.b16 %v895, %v894
    %v943 = vpack.c.b8 %v942, %v941
    %944 = vst [vmem:[#allocation7] sm:$0xff] %v898
    %945 = vst [vmem:[#allocation7 + $0x8] sm:$0xff] %v901
    %946 = vst [vmem:[#allocation7 + $0x10] sm:$0xff] %v904
    %947 = vst [vmem:[#allocation7 + $0x18] sm:$0xff] %v907
    %948 = vst [vmem:[#allocation7 + $0x20] sm:$0xff] %v910
    %949 = vst [vmem:[#allocation7 + $0x28] sm:$0xff] %v913
    %950 = vst [vmem:[#allocation7 + $0x30] sm:$0xff] %v916
    %951 = vst [vmem:[#allocation7 + $0x38] sm:$0xff] %v919
    %952 = vst [vmem:[#allocation7 + $0x40] sm:$0xff] %v922
    %953 = vst [vmem:[#allocation7 + $0x48] sm:$0xff] %v925
    %954 = vst [vmem:[#allocation7 + $0x50] sm:$0xff] %v928
    %955 = vst [vmem:[#allocation7 + $0x58] sm:$0xff] %v931
    %956 = vst [vmem:[#allocation7 + $0x60] sm:$0xff] %v934
    %957 = vst [vmem:[#allocation7 + $0x68] sm:$0xff] %v937
    %958 = vst [vmem:[#allocation7 + $0x70] sm:$0xff] %v940
    %959 = vst [vmem:[#allocation7 + $0x78] sm:$0xff] %v943
    // Predicated region
    $region26: #{tpu_custom_call.1} parent=1 // pred_check
      _
    $region27: #{tpu_custom_call.1} parent=1 // pred_check_branch
      %961 = sbr.rel (0) target = $region29
    $region28: #{tpu_custom_call.1} parent=1 // pred_region
      %s963 = ssub.s32 2048, 2048
      %964 = vsyncadd [#allocation4], %s963
      %s965 = sshll.u32 [#allocation7], 4
      %s966 = int_to_ptr.vmem [resolvable:$true] %s965
      %971 = dma.vmem_to_hbm [thread:$0]  %s966, 2048, %s4, [#allocation4], 128, 128, 8
    $region29: #{tpu_custom_call.1} parent=1 // pred_fallthru
      _
    // Predicated region
    $region30: #{tpu_custom_call.1} parent=1 // pred_check
      _
    $region31: #{tpu_custom_call.1} parent=1 // pred_check_branch
      %973 = sbr.rel (0) target = $region33
    $region32: #{tpu_custom_call.1} parent=1 // pred_region
      %974 = dma.done [#allocation4], 2048
    $region33: #{tpu_custom_call.1} parent=1 // pred_fallthru
      _
    %975 = vsyncpa [#allocation3], 1
    %976 = vsyncpa [#allocation6], 1
    %977 = vsyncpa [#allocation4], 1

</llo_original>
